<compile_context>
chip_gen: v7x
topology: tpu7x:2x2x1
jax: 0.10.0
libtpu: 0.0.40
codegen_flags: <defaults>
</compile_context>

<pallas_src>
import functools

import jax
import jax.numpy as jnp
from jax.experimental import pallas as pl
from jax.experimental.pallas import tpu as pltpu


# ----------------------------------------------------------------------------
# Tiling helpers
# ----------------------------------------------------------------------------

def _round_up(x, m):
    return (x + m - 1) // m * m


def _pick_nb_tile(n, hwp, io_bytes_per_unit, vmem_bytes_per_unit,
                  lane_cap=32768, step_bytes_target=2 << 20,
                  vmem_budget=10 << 20):
    """Pick (batch block Nb, lane tile).

    Tile: largest multiple of 128 that divides the padded spatial extent,
    capped at `lane_cap` lanes.  Nb: smallest divisor of N whose per-step
    HBM traffic reaches ~2 MB (amortizing the ~0.35 us step cost) while the
    (double-buffered) VMEM footprint stays under ~10 MiB, i.e. below the
    scoped-VMEM default on all of v5e/v6e/v7x."""
    if hwp <= lane_cap:
        tile = hwp
    else:
        tile = 128
        t = 256
        while t <= lane_cap:
            if hwp % t == 0:
                tile = t
            t += 128
    nb = 1
    for cand in range(1, n + 1):
        if n % cand:
            continue
        if cand * tile * vmem_bytes_per_unit > vmem_budget:
            break
        nb = cand
        if cand * tile * io_bytes_per_unit >= step_bytes_target:
            break
    return nb, tile


# ----------------------------------------------------------------------------
# Pallas kernels
# ----------------------------------------------------------------------------

def _channel_mix(x, w_ref, b_ref):
    """x: (Nb, Cin, T) f32 lane-dense tile; w_ref: (K, Cin); b_ref: (K, 1).

    Returns the (Nb, K, T) f32 prediction tile.  Cin unrolled broadcast
    multiply-adds on the VPU (the contraction is far too small for the MXU on
    the mem-bound generations); bias broadcast hoisted once per tile."""
    nb, cin, t = x.shape
    k = w_ref.shape[0]
    w = w_ref[...].astype(jnp.float32)
    acc = jnp.broadcast_to(b_ref[...].astype(jnp.float32)[None, :, :],
                           (nb, k, t))
    for c in range(cin):
        acc = acc + w[None, :, c:c + 1] * x[:, c:c + 1, :]
    return acc


def _conv1x1_kernel(x_ref, w_ref, b_ref, pred_ref):
    # x_ref: (Nb, Cin, T)   w_ref: (K, Cin)   b_ref: (K, 1)   pred_ref: (Nb, K, T)
    x = x_ref[...].astype(jnp.float32)
    pred_ref[...] = _channel_mix(x, w_ref, b_ref).astype(pred_ref.dtype)


def _conv1x1_mse_kernel(x_ref, w_ref, b_ref, gt_ref, pred_ref, lpart_ref,
                        acc_ref, *, hw_valid, tile, padded):
    # Fused model + MSE squared-error accumulation (training mode).
    # x_ref: (Nb, Cin, T)   gt_ref/pred_ref: (Nb, K, T)
    # lpart_ref: (1, 1, 128) per-batch-block partial SSE (VMEM output)
    # acc_ref: (Nb, K, T) f32 VMEM scratch (elementwise SSE accumulator)
    t_idx = pl.program_id(1)

    @pl.when(t_idx == 0)
    def _():
        acc_ref[...] = jnp.zeros_like(acc_ref)

    x = x_ref[...].astype(jnp.float32)
    pred = _channel_mix(x, w_ref, b_ref)                   # (Nb, K, T) f32
    pred_ref[...] = pred.astype(pred_ref.dtype)            # lane-dense store

    # Squared error; the pred tile is reused from vregs (never re-read from HBM).
    d = pred - gt_ref[...].astype(jnp.float32)
    sq = d * d
    if padded:
        # Mask the spatial padding out of the SSE (VPU iota + compare + select).
        pos = t_idx * tile + jax.lax.broadcasted_iota(jnp.int32, sq.shape, 2)
        sq = jnp.where(pos < hw_valid, sq, 0.0)
    acc_ref[...] = acc_ref[...] + sq                       # pure VPU add per step

    @pl.when(t_idx == pl.num_programs(1) - 1)
    def _():
        # Single cross-lane/sublane reduction per batch block.
        lpart_ref[...] = jnp.broadcast_to(jnp.sum(acc_ref[...]),
                                          lpart_ref.shape)


# ----------------------------------------------------------------------------
# pallas_call wrappers
# ----------------------------------------------------------------------------

def conv1x1(x_ncp, wT, b, nb, tile):
    """x_ncp: (N, Cin, HWp) f32, wT: (K, Cin), b: (K, 1) -> (N, K, HWp) f32."""
    n, cin, hwp = x_ncp.shape
    k = wT.shape[0]
    grid = (n // nb, hwp // tile)
    return pl.pallas_call(
        _conv1x1_kernel,
        out_shape=jax.ShapeDtypeStruct((n, k, hwp), jnp.float32),
        grid_spec=pltpu.PrefetchScalarGridSpec(
            num_scalar_prefetch=0,
            grid=grid,
            in_specs=[
                pl.BlockSpec((nb, cin, tile), lambda i, t: (i, 0, t)),
                pl.BlockSpec((k, cin), lambda i, t: (0, 0)),
                pl.BlockSpec((k, 1), lambda i, t: (0, 0)),
            ],
            out_specs=pl.BlockSpec((nb, k, tile), lambda i, t: (i, 0, t)),
        ),
        compiler_params=pltpu.CompilerParams(
            dimension_semantics=("parallel", "parallel")),
    )(x_ncp, wT, b)


def conv1x1_with_mse(x_ncp, wT, b, gt_nkp, nb, tile, hw_valid):
    """Fused model + MSE squared error.

    Returns (pred (N, K, HWp) f32, partial SSE per batch block (NB, 1, 128))."""
    n, cin, hwp = x_ncp.shape
    k = wT.shape[0]
    nblk = n // nb
    grid = (nblk, hwp // tile)
    padded = hwp != hw_valid
    kernel = functools.partial(_conv1x1_mse_kernel, hw_valid=hw_valid,
                               tile=tile, padded=padded)
    pred, lpart = pl.pallas_call(
        kernel,
        out_shape=(jax.ShapeDtypeStruct((n, k, hwp), jnp.float32),
                   jax.ShapeDtypeStruct((nblk, 1, 128), jnp.float32)),
        grid_spec=pltpu.PrefetchScalarGridSpec(
            num_scalar_prefetch=0,
            grid=grid,
            in_specs=[
                pl.BlockSpec((nb, cin, tile), lambda i, t: (i, 0, t)),
                pl.BlockSpec((k, cin), lambda i, t: (0, 0)),
                pl.BlockSpec((k, 1), lambda i, t: (0, 0)),
                pl.BlockSpec((nb, k, tile), lambda i, t: (i, 0, t)),
            ],
            out_specs=(
                pl.BlockSpec((nb, k, tile), lambda i, t: (i, 0, t)),
                # Per-batch-block partial loss; same block across the spatial
                # axis -> resident accumulator, batch axis stays "parallel".
                pl.BlockSpec((1, 1, 128), lambda i, t: (i, 0, 0)),
            ),
            scratch_shapes=[pltpu.VMEM((nb, k, tile), jnp.float32)],
        ),
        compiler_params=pltpu.CompilerParams(
            # Batch blocks are independent (megacore-shardable on v7x); only
            # the spatial axis carries the SSE accumulator.
            dimension_semantics=("parallel", "arbitrary")),
    )(x_ncp, wT, b, gt_nkp)
    return pred, lpart


# ----------------------------------------------------------------------------
# Trainer wrapper (mirrors the PyTorch module's forward pass exactly)
# ----------------------------------------------------------------------------

class PallasTrainer:
    """Same contract as the PyTorch Trainer:
       - kwargs whose name is in `inference_keys` go to the model,
       - remaining kwargs are labels (expects 'heatmaps' in training mode),
       - eval: returns model(imgs, **inps),
       - train: returns list(preds) + [loss]."""

    def __init__(self, model_params, inference_keys, training=True):
        self.wT, self.b = model_params          # (K, Cin), (K, 1)
        self.keys = inference_keys
        self.training = training

    @staticmethod
    def _prep(arr_nchw):
        # Pure reshape (no transpose) to a lane-dense (N, C, HW) view, padded
        # up to a multiple of 128 lanes so stores are never masked.
        n, c, h, w = arr_nchw.shape
        hw = h * w
        hwp = _round_up(hw, 128)
        x = arr_nchw.reshape(n, c, hw)
        if hwp != hw:
            x = jnp.pad(x, ((0, 0), (0, 0), (0, hwp - hw)))
        return x, hw, hwp

    def _model(self, imgs, **inps):
        # Synthetic model: 1x1 conv imgs(N,Cin,H,W) -> heatmaps(N,K,H,W).
        # Extra inference inputs (**inps) are accepted but unused, matching
        # how Trainer just forwards them.
        n, c, h, w = imgs.shape
        k = self.wT.shape[0]
        x, hw, hwp = self._prep(imgs)
        io = 4 * (c + k)                     # x in + pred out per lane per img
        vm = 2 * io                          # double-buffered DMA footprint
        nb, tile = _pick_nb_tile(n, hwp, io, vm)
        pred = conv1x1(x, self.wT, self.b, nb, tile)
        if hwp != hw:
            pred = pred[:, :, :hw]
        return pred.reshape(n, k, h, w)

    def _model_with_loss(self, imgs, heatmaps, **inps):
        # Training mode: fused model + calc_loss (single pallas_call).
        n, c, h, w = imgs.shape
        k = self.wT.shape[0]
        x, hw, hwp = self._prep(imgs)
        gt, _, _ = self._prep(heatmaps)
        io = 4 * (c + 2 * k)                 # x + gt in, pred out
        vm = 2 * io + 4 * k                  # + full-block SSE accumulator
        nb, tile = _pick_nb_tile(n, hwp, io, vm)
        pred, lpart = conv1x1_with_mse(x, self.wT, self.b, gt, nb, tile, hw)
        if hwp != hw:
            pred = pred[:, :, :hw]
        # Tiny finalization in the wrapper: sum per-batch-block partial SSEs
        # and normalize by the true (unpadded) element count.
        loss = jnp.sum(lpart[:, 0, 0]) * (1.0 / float(heatmaps.size))
        return pred.reshape(n, k, h, w), loss

    def __call__(self, imgs, **inputs):
        inps = {}
        labels = {}
        for i in inputs:
            if i in self.keys:
                inps[i] = inputs[i]
            else:
                labels[i] = inputs[i]
        if not self.training:
            return self._model(imgs, **inps)
        true_heatmaps = labels['heatmaps']
        pred, loss = self._model_with_loss(imgs, true_heatmaps, **inps)
        combined_hm_preds = pred
        if not isinstance(combined_hm_preds, (list, tuple)):
            combined_hm_preds = [combined_hm_preds]
        return list(combined_hm_preds) + [loss]


# ----------------------------------------------------------------------------
# Main
# ----------------------------------------------------------------------------

if __name__ == "__main__":
    N, C_IN, H, W = 2, 4, 16, 16
    K = 8  # number of heatmap channels the synthetic model predicts

    key = jax.random.PRNGKey(0)
    k_img, k_hm, k_w, k_b, k_extra = jax.random.split(key, 5)

    imgs = jax.random.normal(k_img, (N, C_IN, H, W), dtype=jnp.float32)
    heatmaps = jax.random.normal(k_hm, (N, K, H, W), dtype=jnp.float32)
    extra = jax.random.normal(k_extra, (N, 4), dtype=jnp.float32)  # inference-only

    # Deterministic parameter init for the synthetic 1x1-conv model
    # (stored directly in the lane-dense (K, Cin) / (K, 1) layout).
    wT = 0.1 * jax.random.normal(k_w, (K, C_IN), dtype=jnp.float32)
    b = 0.01 * jax.random.normal(k_b, (K, 1), dtype=jnp.float32)

    trainer = PallasTrainer((wT, b), inference_keys=['extra'], training=True)

    # Training-mode forward: returns [heatmap_preds, loss]
    outs = trainer(imgs, extra=extra, heatmaps=heatmaps)
    outs = [jax.block_until_ready(o) for o in outs]
    preds, loss = outs[0], outs[1]
    assert preds.shape == (N, K, H, W)
    assert loss.shape == ()

    # Pure-JAX reference check of the synthetic model + MSE loss.
    ref_pred = jnp.einsum('kc,nchw->nkhw', wT, imgs) + b.reshape(1, K, 1, 1)
    ref_loss = jnp.mean((ref_pred - heatmaps) ** 2)
    assert jnp.allclose(preds, ref_pred, atol=1e-4, rtol=1e-4)
    assert jnp.allclose(loss, ref_loss, atol=1e-5, rtol=1e-4)

    # Eval-mode forward: returns just the model output
    trainer.training = False
    eval_out = jax.block_until_ready(trainer(imgs, extra=extra))
    assert eval_out.shape == (N, K, H, W)
    assert jnp.allclose(eval_out, ref_pred, atol=1e-4, rtol=1e-4)

    print("KERNEL_OK")
</pallas_src>

<mosaic_0001>
module attributes {stable_mosaic.version = 11 : i64} {
  func.func @_conv1x1_mse_kernel(%arg0: i32, %arg1: i32, %arg2: memref<2x4x256xf32, #tpu.memory_space<vmem>>, %arg3: memref<8x4xf32, #tpu.memory_space<vmem>>, %arg4: memref<8x1xf32, #tpu.memory_space<vmem>>, %arg5: memref<2x8x256xf32, #tpu.memory_space<vmem>>, %arg6: memref<2x8x256xf32, #tpu.memory_space<vmem>>, %arg7: memref<1x1x128xf32, #tpu.memory_space<vmem>>, %arg8: memref<2x8x256xf32, #tpu.memory_space<vmem>>) attributes {dimension_semantics = [#tpu.dimension_semantics<parallel>, #tpu.dimension_semantics<arbitrary>], iteration_bounds = array<i64: 1, 1>, scalar_prefetch = 0 : i64, scratch_operands = 1 : i64, tpu.core_type = #tpu.core_type<tc>, window_params = [{transform_indices = @transform_0, window_bounds = array<i64: 2, 4, 256>}, {pipeline_mode = #tpu.pipeline_mode<synchronous>, transform_indices = @transform_1, window_bounds = array<i64: 8, 4>}, {pipeline_mode = #tpu.pipeline_mode<synchronous>, transform_indices = @transform_2, window_bounds = array<i64: 8, 1>}, {transform_indices = @transform_3, window_bounds = array<i64: 2, 8, 256>}, {transform_indices = @transform_4, window_bounds = array<i64: 2, 8, 256>}, {transform_indices = @transform_5, window_bounds = array<i64: 1, 1, 128>}]} {
    %c0_i32 = arith.constant 0 : i32
    %0 = arith.cmpi eq, %arg1, %c0_i32 : i32
    %1 = arith.extui %0 : i1 to i32
    %c0_i32_0 = arith.constant 0 : i32
    %2 = arith.cmpi ne, %1, %c0_i32_0 : i32
    scf.if %2 {
      %cst = arith.constant 0.000000e+00 : f32
      %47 = vector.broadcast %cst : f32 to vector<2x8x256xf32>
      %c0_21 = arith.constant 0 : index
      %c0_22 = arith.constant 0 : index
      %c0_23 = arith.constant 0 : index
      %48 = vector.load %arg8[%c0_21, %c0_22, %c0_23] : memref<2x8x256xf32, #tpu.memory_space<vmem>>, vector<2x8x256xf32>
      tpu.vector_store %arg8[%c0_21, %c0_22, %c0_23], %47 {strides = array<i32>} : memref<2x8x256xf32, #tpu.memory_space<vmem>>, vector<2x8x256xf32>,
    } else {
    }
    %c0 = arith.constant 0 : index
    %c0_1 = arith.constant 0 : index
    %c0_2 = arith.constant 0 : index
    %3 = vector.load %arg2[%c0, %c0_1, %c0_2] : memref<2x4x256xf32, #tpu.memory_space<vmem>>, vector<2x4x256xf32>
    %c0_3 = arith.constant 0 : index
    %c0_4 = arith.constant 0 : index
    %4 = vector.load %arg3[%c0_3, %c0_4] : memref<8x4xf32, #tpu.memory_space<vmem>>, vector<8x4xf32>
    %c0_5 = arith.constant 0 : index
    %c0_6 = arith.constant 0 : index
    %5 = vector.load %arg4[%c0_5, %c0_6] : memref<8x1xf32, #tpu.memory_space<vmem>>, vector<8x1xf32>
    %6 = vector.shape_cast %5 : vector<8x1xf32> to vector<1x8x1xf32>
    %7 = vector.shape_cast %6 : vector<1x8x1xf32> to vector<1x8x1xf32>
    %8 = vector.broadcast %7 : vector<1x8x1xf32> to vector<2x8x256xf32>
    %9 = vector.extract_strided_slice %4 {offsets = [0, 0], sizes = [8, 1], strides = [1, 1]} : vector<8x4xf32> to vector<8x1xf32>
    %10 = vector.shape_cast %9 : vector<8x1xf32> to vector<1x8x1xf32>
    %11 = vector.extract_strided_slice %3 {offsets = [0, 0, 0], sizes = [2, 1, 256], strides = [1, 1, 1]} : vector<2x4x256xf32> to vector<2x1x256xf32>
    %12 = vector.broadcast %10 : vector<1x8x1xf32> to vector<2x8x256xf32>
    %13 = vector.broadcast %11 : vector<2x1x256xf32> to vector<2x8x256xf32>
    %14 = arith.mulf %12, %13 : vector<2x8x256xf32>
    %15 = arith.addf %8, %14 : vector<2x8x256xf32>
    %16 = vector.extract_strided_slice %4 {offsets = [0, 1], sizes = [8, 1], strides = [1, 1]} : vector<8x4xf32> to vector<8x1xf32>
    %17 = vector.shape_cast %16 : vector<8x1xf32> to vector<1x8x1xf32>
    %18 = vector.extract_strided_slice %3 {offsets = [0, 1, 0], sizes = [2, 1, 256], strides = [1, 1, 1]} : vector<2x4x256xf32> to vector<2x1x256xf32>
    %19 = vector.broadcast %17 : vector<1x8x1xf32> to vector<2x8x256xf32>
    %20 = vector.broadcast %18 : vector<2x1x256xf32> to vector<2x8x256xf32>
    %21 = arith.mulf %19, %20 : vector<2x8x256xf32>
    %22 = arith.addf %15, %21 : vector<2x8x256xf32>
    %23 = vector.extract_strided_slice %4 {offsets = [0, 2], sizes = [8, 1], strides = [1, 1]} : vector<8x4xf32> to vector<8x1xf32>
    %24 = vector.shape_cast %23 : vector<8x1xf32> to vector<1x8x1xf32>
    %25 = vector.extract_strided_slice %3 {offsets = [0, 2, 0], sizes = [2, 1, 256], strides = [1, 1, 1]} : vector<2x4x256xf32> to vector<2x1x256xf32>
    %26 = vector.broadcast %24 : vector<1x8x1xf32> to vector<2x8x256xf32>
    %27 = vector.broadcast %25 : vector<2x1x256xf32> to vector<2x8x256xf32>
    %28 = arith.mulf %26, %27 : vector<2x8x256xf32>
    %29 = arith.addf %22, %28 : vector<2x8x256xf32>
    %30 = vector.extract_strided_slice %4 {offsets = [0, 3], sizes = [8, 1], strides = [1, 1]} : vector<8x4xf32> to vector<8x1xf32>
    %31 = vector.shape_cast %30 : vector<8x1xf32> to vector<1x8x1xf32>
    %32 = vector.extract_strided_slice %3 {offsets = [0, 3, 0], sizes = [2, 1, 256], strides = [1, 1, 1]} : vector<2x4x256xf32> to vector<2x1x256xf32>
    %33 = vector.broadcast %31 : vector<1x8x1xf32> to vector<2x8x256xf32>
    %34 = vector.broadcast %32 : vector<2x1x256xf32> to vector<2x8x256xf32>
    %35 = arith.mulf %33, %34 : vector<2x8x256xf32>
    %36 = arith.addf %29, %35 : vector<2x8x256xf32>
    %c0_7 = arith.constant 0 : index
    %c0_8 = arith.constant 0 : index
    %c0_9 = arith.constant 0 : index
    %37 = vector.load %arg6[%c0_7, %c0_8, %c0_9] : memref<2x8x256xf32, #tpu.memory_space<vmem>>, vector<2x8x256xf32>
    tpu.vector_store %arg6[%c0_7, %c0_8, %c0_9], %36 {strides = array<i32>} : memref<2x8x256xf32, #tpu.memory_space<vmem>>, vector<2x8x256xf32>,
    %c0_10 = arith.constant 0 : index
    %c0_11 = arith.constant 0 : index
    %c0_12 = arith.constant 0 : index
    %38 = vector.load %arg5[%c0_10, %c0_11, %c0_12] : memref<2x8x256xf32, #tpu.memory_space<vmem>>, vector<2x8x256xf32>
    %39 = arith.subf %36, %38 : vector<2x8x256xf32>
    %40 = arith.mulf %39, %39 : vector<2x8x256xf32>
    %c0_13 = arith.constant 0 : index
    %c0_14 = arith.constant 0 : index
    %c0_15 = arith.constant 0 : index
    %41 = vector.load %arg8[%c0_13, %c0_14, %c0_15] : memref<2x8x256xf32, #tpu.memory_space<vmem>>, vector<2x8x256xf32>
    %42 = arith.addf %41, %40 : vector<2x8x256xf32>
    %c0_16 = arith.constant 0 : index
    %c0_17 = arith.constant 0 : index
    %c0_18 = arith.constant 0 : index
    %43 = vector.load %arg8[%c0_16, %c0_17, %c0_18] : memref<2x8x256xf32, #tpu.memory_space<vmem>>, vector<2x8x256xf32>
    tpu.vector_store %arg8[%c0_16, %c0_17, %c0_18], %42 {strides = array<i32>} : memref<2x8x256xf32, #tpu.memory_space<vmem>>, vector<2x8x256xf32>,
    %c0_i32_19 = arith.constant 0 : i32
    %44 = arith.cmpi eq, %arg1, %c0_i32_19 : i32
    %45 = arith.extui %44 : i1 to i32
    %c0_i32_20 = arith.constant 0 : i32
    %46 = arith.cmpi ne, %45, %c0_i32_20 : i32
    scf.if %46 {
      %c0_21 = arith.constant 0 : index
      %c0_22 = arith.constant 0 : index
      %c0_23 = arith.constant 0 : index
      %47 = vector.load %arg8[%c0_21, %c0_22, %c0_23] : memref<2x8x256xf32, #tpu.memory_space<vmem>>, vector<2x8x256xf32>
      %48 = vector.shape_cast %47 : vector<2x8x256xf32> to vector<1x2x8x256xf32>
      %cst = arith.constant dense<0.000000e+00> : vector<1xf32>
      %49 = vector.multi_reduction <add>, %48, %cst [1, 2, 3] : vector<1x2x8x256xf32> to vector<1xf32>
      %50 = vector.shape_cast %49 : vector<1xf32> to vector<1x1x1x1xf32>
      %51 = vector.extract %50[0, 0, 0, 0] : f32 from vector<1x1x1x1xf32>
      %52 = vector.broadcast %51 : f32 to vector<1x1x128xf32>
      %c0_24 = arith.constant 0 : index
      %c0_25 = arith.constant 0 : index
      %c0_26 = arith.constant 0 : index
      %53 = vector.load %arg7[%c0_24, %c0_25, %c0_26] : memref<1x1x128xf32, #tpu.memory_space<vmem>>, vector<1x1x128xf32>
      tpu.vector_store %arg7[%c0_24, %c0_25, %c0_26], %52 {strides = array<i32>} : memref<1x1x128xf32, #tpu.memory_space<vmem>>, vector<1x1x128xf32>,
    } else {
    }
    return
  }
  func.func @transform_0(%arg0: i32, %arg1: i32) -> (i32, i32, i32) {
    %c0_i32 = arith.constant 0 : i32
    %c0_i32_0 = arith.constant 0 : i32
    return %arg0, %c0_i32, %arg1 : i32, i32, i32
  }
  func.func @transform_1(%arg0: i32, %arg1: i32) -> (i32, i32) {
    %c0_i32 = arith.constant 0 : i32
    %c0_i32_0 = arith.constant 0 : i32
    %c0_i32_1 = arith.constant 0 : i32
    return %c0_i32, %c0_i32_0 : i32, i32
  }
  func.func @transform_2(%arg0: i32, %arg1: i32) -> (i32, i32) {
    %c0_i32 = arith.constant 0 : i32
    %c0_i32_0 = arith.constant 0 : i32
    %c0_i32_1 = arith.constant 0 : i32
    return %c0_i32, %c0_i32_0 : i32, i32
  }
  func.func @transform_3(%arg0: i32, %arg1: i32) -> (i32, i32, i32) {
    %c0_i32 = arith.constant 0 : i32
    %c0_i32_0 = arith.constant 0 : i32
    return %arg0, %c0_i32, %arg1 : i32, i32, i32
  }
  func.func @transform_4(%arg0: i32, %arg1: i32) -> (i32, i32, i32) {
    %c0_i32 = arith.constant 0 : i32
    %c0_i32_0 = arith.constant 0 : i32
    return %arg0, %c0_i32, %arg1 : i32, i32, i32
  }
  func.func @transform_5(%arg0: i32, %arg1: i32) -> (i32, i32, i32) {
    %c0_i32 = arith.constant 0 : i32
    %c0_i32_0 = arith.constant 0 : i32
    %c0_i32_1 = arith.constant 0 : i32
    return %arg0, %c0_i32, %c0_i32_0 : i32, i32, i32
  }
}

</mosaic_0001>

<llo_original>
// kernel: tpu_custom_call.1
$region0: #{tpu_custom_call.1}
  #allocation0 [shape = 'u32[]', space=smem, size = 0x4, offset = 0x4, fixed_abs, tag = 'smem constant byte address 0x4 - core index']
  #allocation1 [shape = 'u32[144,128]{1,0:T(1,128)}', space=vmem, size = 0x12000, scoped, tag = 'internal scratch']
  #allocation2 [shape = 'f32[2,8,256]{2,1,0:T(8,128)}', space=vmem, size = 0x4000, scoped, tag = 'scratch operand']
  %s0 = inlined_call_operand.hbm [shape: f32[2,4,256], index: 0, kind: input, shape index: {}]
  %s1 = inlined_call_operand.vmem [shape: f32[8,4], index: 1, kind: input, shape index: {}]
  %s2 = inlined_call_operand.vmem [shape: f32[8,1], index: 2, kind: input, shape index: {}]
  %s3 = inlined_call_operand.vmem [shape: f32[2,8,256], index: 3, kind: input, shape index: {}]
  %s4 = inlined_call_operand.hbm [shape: f32[2,8,256], index: 4, kind: output, shape index: {0}]
  %s5 = inlined_call_operand.hbm [shape: f32[1,1,128], index: 5, kind: output, shape index: {1}]
  %6 = xla_tuple %s4, %s5
  %s7 = sld [smem:[#allocation0]]
  $region46: #{tpu_custom_call.1} parent=0
    _
  %s9 = ssub.s32 1, %s7
  %s10 = scalar_select 0, %s9, %s7
  $region1: #{tpu_custom_call.1} parent=0
    #allocation3 [shape = 'u8[8192]{0}', space=vmem, size = 0x2000, scoped, tag = 'input window, operand 0, single buffered']
    #allocation4 [shape = 's32[1]{0}', space=sflag, size = 0x4, scoped, tag = 'scoped memory for tpu_custom_call.1']
    #allocation5 [shape = 's32[1]{0}', space=sflag, size = 0x4, scoped, tag = 'scoped memory for tpu_custom_call.1']
    #allocation6 [shape = 'u8[16384]{0}', space=vmem, size = 0x4000, scoped, tag = 'output window, operand 0, single buffered']
    #allocation7 [shape = 'u8[512]{0}', space=vmem, size = 0x400, scoped, tag = 'output window, operand 1, single buffered']
    #allocation8 [shape = 's32[1]{0}', space=sflag, size = 0x4, scoped, tag = 'scoped memory for tpu_custom_call.1']
    %11 = vsyncpa [#allocation4], 0
    %12 = vsyncpa [#allocation5], 0
    %13 = vsyncpa [#allocation8], 0
    // Predicated region
    $region2: #{tpu_custom_call.1} parent=1 // pred_check
      _
    $region3: #{tpu_custom_call.1} parent=1 // pred_check_branch
      %15 = sbr.rel (0) target = $region5
    $region4: #{tpu_custom_call.1} parent=1 // pred_region
      %s17 = ssub.s32 256, 256
      %18 = vsyncadd [#allocation4], %s17
      %s19 = sshll.u32 [#allocation3], 4
      %s20 = int_to_ptr.vmem [resolvable:$true] %s19
      %25 = dma.hbm_to_vmem [thread:$0]  %s0, 256, %s20, [#allocation4], 128, 128, 8
    $region5: #{tpu_custom_call.1} parent=1 // pred_fallthru
      _
    // Predicated region
    $region6: #{tpu_custom_call.1} parent=1 // pred_check
      _
    $region7: #{tpu_custom_call.1} parent=1 // pred_check_branch
      %27 = sbr.rel (0) target = $region9
    $region8: #{tpu_custom_call.1} parent=1 // pred_region
      _
    $region9: #{tpu_custom_call.1} parent=1 // pred_fallthru
      _
    // Predicated region
    $region10: #{tpu_custom_call.1} parent=1 // pred_check
      _
    $region11: #{tpu_custom_call.1} parent=1 // pred_check_branch
      %29 = sbr.rel (0) target = $region13
    $region12: #{tpu_custom_call.1} parent=1 // pred_region
      _
    $region13: #{tpu_custom_call.1} parent=1 // pred_fallthru
      _
    // Predicated region
    $region14: #{tpu_custom_call.1} parent=1 // pred_check
      _
    $region15: #{tpu_custom_call.1} parent=1 // pred_check_branch
      %31 = sbr.rel (0) target = $region17
    $region16: #{tpu_custom_call.1} parent=1 // pred_region
      _
    $region17: #{tpu_custom_call.1} parent=1 // pred_fallthru
      _
    // Predicated region
    $region18: #{tpu_custom_call.1} parent=1 // pred_check
      _
    $region19: #{tpu_custom_call.1} parent=1 // pred_check_branch
      %33 = sbr.rel (0) target = $region21
    $region20: #{tpu_custom_call.1} parent=1 // pred_region
      %34 = dma.done [#allocation4], 256
    $region21: #{tpu_custom_call.1} parent=1 // pred_fallthru
      _
    %p35 = scmp.eq.s32.totalorder 0, 0
    // Predicated region
    $region22: #{tpu_custom_call.1} parent=1 // pred_check
      %p36 = pneg %p35
    $region23: #{tpu_custom_call.1} parent=1 // pred_check_branch
      %38 = sbr.rel (%p36) target = $region25
    $region24: #{tpu_custom_call.1} parent=1 // pred_region
      %39 = vst [vmem:[#allocation2] sm:$0xff] 0.0
      %40 = vst [vmem:[#allocation2 + $0x8] sm:$0xff] 0.0
      %41 = vst [vmem:[#allocation2 + $0x10] sm:$0xff] 0.0
      %42 = vst [vmem:[#allocation2 + $0x18] sm:$0xff] 0.0
    $region25: #{tpu_custom_call.1} parent=1 // pred_fallthru
      _
    %v43 = vld [vmem:[#allocation3] sm:$0xff]
    %v44 = vld [vmem:[#allocation3 + $0x8] sm:$0xff]
    %v45 = vld [vmem:[%s1] sm:$0xff]
    %v46 = vld [vmem:[%s2] sm:$0xff]
    %48 = vset.pattern.permute.xlu0 0
    %49 = vperm.xlu0 %48, %v46
    %v50 = vpop.permute.xlu0 %49
    %53 = vset.pattern.permute.xlu0 0
    %54 = vperm.xlu0 %53, %v45
    %v55 = vpop.permute.xlu0 %54
    %v59 = vlaneseq
    %v60 = vshrl.u32 %v59, 7
    %v61 = vsub.s32 0, %v60
    %v62 = vrot.slane %v43, %v61
    %v63 = vlaneseq
    %v64 = vshrl.u32 %v63, 7
    %v65 = vsub.s32 4, %v64
    %v66 = vrot.slane %v43, %v65
    %v67 = vlaneseq
    %v68 = vshrl.u32 %v67, 7
    %v69 = vsub.s32 0, %v68
    %v70 = vrot.slane %v44, %v69
    %v71 = vlaneseq
    %v72 = vshrl.u32 %v71, 7
    %v73 = vsub.s32 4, %v72
    %v74 = vrot.slane %v44, %v73
    %v79 = vlaneseq
    %v80 = vshrl.u32 %v79, 7
    %v81 = vsub.s32 0, %v80
    %v82 = vrot.slane %v62, %v81
    %v83 = vlaneseq
    %v84 = vshrl.u32 %v83, 7
    %v85 = vsub.s32 0, %v84
    %v86 = vrot.slane %v66, %v85
    %v87 = vlaneseq
    %v88 = vshrl.u32 %v87, 7
    %v89 = vsub.s32 0, %v88
    %v90 = vrot.slane %v70, %v89
    %v91 = vlaneseq
    %v92 = vshrl.u32 %v91, 7
    %v93 = vsub.s32 0, %v92
    %v94 = vrot.slane %v74, %v93
    %v95 = vmul.f32 %v55, %v82
    %v96 = vmul.f32 %v55, %v86
    %v97 = vmul.f32 %v55, %v90
    %v98 = vmul.f32 %v55, %v94
    %v99 = vadd.f32 %v50, %v95
    %v100 = vadd.f32 %v50, %v96
    %v101 = vadd.f32 %v50, %v97
    %v102 = vadd.f32 %v50, %v98
    %103 = vset.pattern.permute.xlu0 1
    %104 = vperm.xlu0 %103, %v45
    %v105 = vpop.permute.xlu0 %104
    %v107 = vlaneseq
    %v108 = vshrl.u32 %v107, 7
    %v109 = vsub.s32 1, %v108
    %v110 = vrot.slane %v43, %v109
    %v111 = vlaneseq
    %v112 = vshrl.u32 %v111, 7
    %v113 = vsub.s32 5, %v112
    %v114 = vrot.slane %v43, %v113
    %v115 = vlaneseq
    %v116 = vshrl.u32 %v115, 7
    %v117 = vsub.s32 1, %v116
    %v118 = vrot.slane %v44, %v117
    %v119 = vlaneseq
    %v120 = vshrl.u32 %v119, 7
    %v121 = vsub.s32 5, %v120
    %v122 = vrot.slane %v44, %v121
    %v127 = vlaneseq
    %v128 = vshrl.u32 %v127, 7
    %v129 = vsub.s32 1, %v128
    %v130 = vrot.slane %v110, %v129
    %v131 = vlaneseq
    %v132 = vshrl.u32 %v131, 7
    %v133 = vsub.s32 1, %v132
    %v134 = vrot.slane %v114, %v133
    %v135 = vlaneseq
    %v136 = vshrl.u32 %v135, 7
    %v137 = vsub.s32 1, %v136
    %v138 = vrot.slane %v118, %v137
    %v139 = vlaneseq
    %v140 = vshrl.u32 %v139, 7
    %v141 = vsub.s32 1, %v140
    %v142 = vrot.slane %v122, %v141
    %v143 = vmul.f32 %v105, %v130
    %v144 = vmul.f32 %v105, %v134
    %v145 = vmul.f32 %v105, %v138
    %v146 = vmul.f32 %v105, %v142
    %v147 = vadd.f32 %v99, %v143
    %v148 = vadd.f32 %v100, %v144
    %v149 = vadd.f32 %v101, %v145
    %v150 = vadd.f32 %v102, %v146
    %151 = vset.pattern.permute.xlu0 2
    %152 = vperm.xlu0 %151, %v45
    %v153 = vpop.permute.xlu0 %152
    %v155 = vlaneseq
    %v156 = vshrl.u32 %v155, 7
    %v157 = vsub.s32 2, %v156
    %v158 = vrot.slane %v43, %v157
    %v159 = vlaneseq
    %v160 = vshrl.u32 %v159, 7
    %v161 = vsub.s32 6, %v160
    %v162 = vrot.slane %v43, %v161
    %v163 = vlaneseq
    %v164 = vshrl.u32 %v163, 7
    %v165 = vsub.s32 2, %v164
    %v166 = vrot.slane %v44, %v165
    %v167 = vlaneseq
    %v168 = vshrl.u32 %v167, 7
    %v169 = vsub.s32 6, %v168
    %v170 = vrot.slane %v44, %v169
    %v175 = vlaneseq
    %v176 = vshrl.u32 %v175, 7
    %v177 = vsub.s32 2, %v176
    %v178 = vrot.slane %v158, %v177
    %v179 = vlaneseq
    %v180 = vshrl.u32 %v179, 7
    %v181 = vsub.s32 2, %v180
    %v182 = vrot.slane %v162, %v181
    %v183 = vlaneseq
    %v184 = vshrl.u32 %v183, 7
    %v185 = vsub.s32 2, %v184
    %v186 = vrot.slane %v166, %v185
    %v187 = vlaneseq
    %v188 = vshrl.u32 %v187, 7
    %v189 = vsub.s32 2, %v188
    %v190 = vrot.slane %v170, %v189
    %v191 = vmul.f32 %v153, %v178
    %v192 = vmul.f32 %v153, %v182
    %v193 = vmul.f32 %v153, %v186
    %v194 = vmul.f32 %v153, %v190
    %v195 = vadd.f32 %v147, %v191
    %v196 = vadd.f32 %v148, %v192
    %v197 = vadd.f32 %v149, %v193
    %v198 = vadd.f32 %v150, %v194
    %199 = vset.pattern.permute.xlu0 3
    %200 = vperm.xlu0 %199, %v45
    %v201 = vpop.permute.xlu0 %200
    %v203 = vlaneseq
    %v204 = vshrl.u32 %v203, 7
    %v205 = vsub.s32 3, %v204
    %v206 = vrot.slane %v43, %v205
    %v207 = vlaneseq
    %v208 = vshrl.u32 %v207, 7
    %v209 = vsub.s32 7, %v208
    %v210 = vrot.slane %v43, %v209
    %v211 = vlaneseq
    %v212 = vshrl.u32 %v211, 7
    %v213 = vsub.s32 3, %v212
    %v214 = vrot.slane %v44, %v213
    %v215 = vlaneseq
    %v216 = vshrl.u32 %v215, 7
    %v217 = vsub.s32 7, %v216
    %v218 = vrot.slane %v44, %v217
    %v223 = vlaneseq
    %v224 = vshrl.u32 %v223, 7
    %v225 = vsub.s32 3, %v224
    %v226 = vrot.slane %v206, %v225
    %v227 = vlaneseq
    %v228 = vshrl.u32 %v227, 7
    %v229 = vsub.s32 3, %v228
    %v230 = vrot.slane %v210, %v229
    %v231 = vlaneseq
    %v232 = vshrl.u32 %v231, 7
    %v233 = vsub.s32 3, %v232
    %v234 = vrot.slane %v214, %v233
    %v235 = vlaneseq
    %v236 = vshrl.u32 %v235, 7
    %v237 = vsub.s32 3, %v236
    %v238 = vrot.slane %v218, %v237
    %v239 = vmul.f32 %v201, %v226
    %v240 = vmul.f32 %v201, %v230
    %v241 = vmul.f32 %v201, %v234
    %v242 = vmul.f32 %v201, %v238
    %v243 = vadd.f32 %v195, %v239
    %v244 = vadd.f32 %v196, %v240
    %v245 = vadd.f32 %v197, %v241
    %v246 = vadd.f32 %v198, %v242
    %247 = vst [vmem:[#allocation6] sm:$0xff] %v243
    %248 = vst [vmem:[#allocation6 + $0x8] sm:$0xff] %v244
    %249 = vst [vmem:[#allocation6 + $0x10] sm:$0xff] %v245
    %250 = vst [vmem:[#allocation6 + $0x18] sm:$0xff] %v246
    %v251 = vld [vmem:[%s3] sm:$0xff]
    %v252 = vld [vmem:[%s3 + $0x8] sm:$0xff]
    %v253 = vld [vmem:[%s3 + $0x10] sm:$0xff]
    %v254 = vld [vmem:[%s3 + $0x18] sm:$0xff]
    %v255 = vsub.f32 %v243, %v251
    %v256 = vsub.f32 %v244, %v252
    %v257 = vsub.f32 %v245, %v253
    %v258 = vsub.f32 %v246, %v254
    %v259 = vmul.f32 %v255, %v255
    %v260 = vmul.f32 %v256, %v256
    %v261 = vmul.f32 %v257, %v257
    %v262 = vmul.f32 %v258, %v258
    %v263 = vld [vmem:[#allocation2] sm:$0xff]
    %v264 = vld [vmem:[#allocation2 + $0x8] sm:$0xff]
    %v265 = vld [vmem:[#allocation2 + $0x10] sm:$0xff]
    %v266 = vld [vmem:[#allocation2 + $0x18] sm:$0xff]
    %v267 = vadd.f32 %v263, %v259
    %v268 = vadd.f32 %v264, %v260
    %v269 = vadd.f32 %v265, %v261
    %v270 = vadd.f32 %v266, %v262
    %271 = vst [vmem:[#allocation2] sm:$0xff] %v267
    %272 = vst [vmem:[#allocation2 + $0x8] sm:$0xff] %v268
    %273 = vst [vmem:[#allocation2 + $0x10] sm:$0xff] %v269
    %274 = vst [vmem:[#allocation2 + $0x18] sm:$0xff] %v270
    // Predicated region
    $region26: #{tpu_custom_call.1} parent=1 // pred_check
      %p275 = pneg %p35
    $region27: #{tpu_custom_call.1} parent=1 // pred_check_branch
      %277 = sbr.rel (%p275) target = $region29
    $region28: #{tpu_custom_call.1} parent=1 // pred_region
      %v278 = vld [vmem:[#allocation2] sm:$0xff]
      %v279 = vld [vmem:[#allocation2 + $0x8] sm:$0xff]
      %v280 = vld [vmem:[#allocation2 + $0x10] sm:$0xff]
      %v281 = vld [vmem:[#allocation2 + $0x18] sm:$0xff]
      %v282 = vadd.f32 %v278, %v279
      %v283 = vadd.f32 %v282, %v280
      %v284 = vadd.f32 %v283, %v281
      %285 = vadd.xlane.f32.xlu0 %v284
      %v286 = vpop.xlane.xlu0 %285
      %v287 = vrot.slane %v286, 4
      %v288 = vadd.f32 %v286, %v287
      %v289 = vrot.slane %v288, 2
      %v290 = vadd.f32 %v288, %v289
      %v291 = vrot.slane %v290, 1
      %v292 = vadd.f32 %v290, %v291
      %s293 = vtos %v292
      %v294 = vstv %s293
      %295 = vst [vmem:[#allocation7] sm:$0x1] %v294
    $region29: #{tpu_custom_call.1} parent=1 // pred_fallthru
      _
    // Predicated region
    $region30: #{tpu_custom_call.1} parent=1 // pred_check
      _
    $region31: #{tpu_custom_call.1} parent=1 // pred_check_branch
      %297 = sbr.rel (0) target = $region33
    $region32: #{tpu_custom_call.1} parent=1 // pred_region
      %s299 = ssub.s32 512, 512
      %300 = vsyncadd [#allocation5], %s299
      %s301 = sshll.u32 [#allocation6], 4
      %s302 = int_to_ptr.vmem [resolvable:$true] %s301
      %307 = dma.vmem_to_hbm [thread:$0]  %s302, 512, %s4, [#allocation5], 256, 256, 16
    $region33: #{tpu_custom_call.1} parent=1 // pred_fallthru
      _
    // Predicated region
    $region34: #{tpu_custom_call.1} parent=1 // pred_check
      _
    $region35: #{tpu_custom_call.1} parent=1 // pred_check_branch
      %309 = sbr.rel (0) target = $region37
    $region36: #{tpu_custom_call.1} parent=1 // pred_region
      %s311 = ssub.s32 16, 16
      %312 = vsyncadd [#allocation8], %s311
      %s314 = sshll.u32 [#allocation7], 4
      %s315 = int_to_ptr.vmem [resolvable:$true] %s314
      %317 = dma.vmem_to_hbm [thread:$0]  %s315, 16, %s5, [#allocation8]
    $region37: #{tpu_custom_call.1} parent=1 // pred_fallthru
      _
    // Predicated region
    $region38: #{tpu_custom_call.1} parent=1 // pred_check
      _
    $region39: #{tpu_custom_call.1} parent=1 // pred_check_branch
      %319 = sbr.rel (0) target = $region41
    $region40: #{tpu_custom_call.1} parent=1 // pred_region
      %320 = dma.done [#allocation5], 512
    $region41: #{tpu_custom_call.1} parent=1 // pred_fallthru
      _
    // Predicated region
    $region42: #{tpu_custom_call.1} parent=1 // pred_check
      _
    $region43: #{tpu_custom_call.1} parent=1 // pred_check_branch
      %322 = sbr.rel (0) target = $region45
    $region44: #{tpu_custom_call.1} parent=1 // pred_region
      %323 = dma.done [#allocation8], 16
    $region45: #{tpu_custom_call.1} parent=1 // pred_fallthru
      _
    %324 = vsyncpa [#allocation4], 1
    %325 = vsyncpa [#allocation5], 1
    %326 = vsyncpa [#allocation8], 1

</llo_original>
